<compile_context>
chip_gen: v6e
topology: v6e:2x2x1
jax: 0.10.0
libtpu: 0.0.40
codegen_flags: <defaults>
</compile_context>

<pallas_src>
import jax
import jax.numpy as jnp
from jax.experimental import pallas as pl
from jax.experimental.pallas import tpu as pltpu


def light_dnn_kernel(a_ref, b_ref, wcs_ref, bias_sum_ref, o_ref):
    # Elementwise product (VPU); accumulate in f32 regardless of input dtype.
    x = a_ref[...].astype(jnp.float32) * b_ref[...].astype(jnp.float32)   # (TB, D)
    # Folded Linear + row-sum: (a*b) . colsum(W)  -- no MXU, no (D,D) weight.
    xw = x * wcs_ref[...]                                                  # (TB, D) * (1, D)
    s = jnp.sum(xw, axis=-1) + bias_sum_ref[0]                             # (TB,) + scalar
    # Lane-dense store: one unmasked contiguous row per grid step.
    o_ref[...] = jax.nn.sigmoid(s).reshape(o_ref.shape).astype(o_ref.dtype)


def _vmem_budget_bytes():
    """Per-generation budget for the 2-input x 2-buffer pipelined working set."""
    try:
        cap = pltpu.get_tpu_info().vmem_capacity_bytes
    except Exception:  # pragma: no cover - conservative fallback
        cap = 64 << 20
    # v7x (64 MiB phys) -> 32 MiB budget; v5e/v6e (128 MiB phys) -> 32 MiB budget.
    # We always set vmem_limit_bytes to match, so v5e's 16 MiB default scoped
    # limit is lifted rather than violated.
    return min(32 << 20, cap // 2), cap


def _pick_block_b(B, D, itemsize, vmem_budget, num_buffers=2):
    """Largest sublane-aligned batch tile with 2 inputs x num_buffers buffers in budget."""
    bytes_per_row = max(1, D * itemsize)
    rows = vmem_budget // (2 * num_buffers * bytes_per_row)
    rows = max(8, (rows // 8) * 8)
    if rows >= B:
        return B                      # whole batch in a single tile
    if rows >= 128:
        rows = (rows // 128) * 128    # keep the output slab a multiple of 128 lanes
    return rows


def light_dnn_forward(a, b, w_colsum, bias_sum, *, block_b=None):
    """Forward with pre-folded params: sigmoid( (a*b) . colsum(W) + sum(bias) )."""
    B, D = a.shape
    assert b.shape == (B, D)
    itemsize = jnp.dtype(a.dtype).itemsize
    budget, vmem_cap = _vmem_budget_bytes()

    if block_b is None:
        block_b = _pick_block_b(B, D, itemsize, budget)
        # Megacore (v7x): guarantee >= 2 grid steps so the second TensorCore
        # gets a share of the batch (only when the batch is big enough to split).
        if pl.cdiv(B, block_b) < 2 and B > 16:
            block_b = max(8, (((B + 1) // 2 + 7) // 8) * 8)

    if block_b >= B:
        block_b = B                       # single full tile (any B is legal here)
    else:
        block_b = max(8, (block_b // 8) * 8)   # tiled: keep sublane-aligned

    num_tiles = pl.cdiv(B, block_b)       # no wrapper-side padding of a / b
    grid = (num_tiles,)

    out = pl.pallas_call(
        light_dnn_kernel,
        out_shape=jax.ShapeDtypeStruct((num_tiles, 1, block_b), jnp.float32),
        grid=grid,
        in_specs=[
            pl.BlockSpec((block_b, D), lambda i: (i, 0)),        # a tile (pipelined)
            pl.BlockSpec((block_b, D), lambda i: (i, 0)),        # b tile (pipelined)
            pl.BlockSpec((1, D), lambda i: (0, 0)),              # colsum(W), resident
            pl.BlockSpec(memory_space=pltpu.MemorySpace.SMEM),   # sum(bias) scalar
        ],
        # Lane-dense output row per grid step (unmasked vst, one contiguous DMA).
        out_specs=pl.BlockSpec((1, 1, block_b), lambda i: (i, 0, 0)),
        compiler_params=pltpu.CompilerParams(
            dimension_semantics=("parallel",),
            vmem_limit_bytes=int(min(vmem_cap, budget + (8 << 20))),
        ),
        # TODO(synk): if xprof shows exposed DMA at step boundaries on v7x,
        # sweep pipeline_mode=pl.Buffered(3) on the a/b specs (shrink block_b
        # so 2 inputs x 3 buffers still fit the budget).
    )(a, b, w_colsum, bias_sum)

    # Rows past B come from the partial final input block (undefined data) and
    # are simply discarded; nothing in the kernel reduces across the batch axis.
    return out.reshape(-1)[:B]


def fold_params(w, bias):
    """Fold (W, bias) once per weight update: colsum(W) and sum(bias)."""
    w_colsum = jnp.sum(w.astype(jnp.float32), axis=0).reshape(1, -1)   # (1, D)
    bias_sum = jnp.sum(bias.astype(jnp.float32)).reshape(1)            # (1,)
    return w_colsum, bias_sum


class LightDnn:
    """Mirrors the torch module; (W, bias) are folded once at construction and
    cached across forward calls instead of re-reading the (D, D) weight."""

    def __init__(self, w, bias):
        self.w_colsum, self.bias_sum = fold_params(w, bias)

    def __call__(self, a, b, *, block_b=None):
        return light_dnn_forward(a, b, self.w_colsum, self.bias_sum, block_b=block_b)


def light_dnn_ref(a, b, w, bias):
    # Faithful to the torch module: Linear (W is (out, in)) then sum then sigmoid.
    x = a * b
    y = x @ w.T + bias
    return jax.nn.sigmoid(jnp.sum(y, axis=-1))


if __name__ == "__main__":
    key = jax.random.PRNGKey(0)
    ka, kb, kw, kbias, ka2, kb2 = jax.random.split(key, 6)

    B, D = 8, 32
    a = jax.random.normal(ka, (B, D), dtype=jnp.float32)
    b = jax.random.normal(kb, (B, D), dtype=jnp.float32)

    # Deterministic "parameters" mimicking nn.Linear(dim, dim) init U(-1/sqrt(D), 1/sqrt(D))
    bound = 1.0 / jnp.sqrt(jnp.float32(D))
    w = jax.random.uniform(kw, (D, D), dtype=jnp.float32, minval=-bound, maxval=bound)
    bias = jax.random.uniform(kbias, (D,), dtype=jnp.float32, minval=-bound, maxval=bound)

    model = LightDnn(w, bias)   # weights folded once, reused across calls

    out = model(a, b)
    jax.block_until_ready(out)
    ref = light_dnn_ref(a, b, w, bias)
    assert out.shape == (B,)
    assert jnp.allclose(out, ref, atol=1e-5, rtol=1e-5)

    # Second check: batch not divisible by the tile -> exercises the no-pad
    # partial-final-block path (grid = cdiv(B, block_b), tail rows discarded).
    B2 = 20
    a2 = jax.random.normal(ka2, (B2, D), dtype=jnp.float32)
    b2 = jax.random.normal(kb2, (B2, D), dtype=jnp.float32)
    out2 = model(a2, b2, block_b=8)
    jax.block_until_ready(out2)
    ref2 = light_dnn_ref(a2, b2, w, bias)
    assert out2.shape == (B2,)
    assert jnp.allclose(out2, ref2, atol=1e-5, rtol=1e-5)

    print("KERNEL_OK")
</pallas_src>

<mosaic_0001>
module attributes {stable_mosaic.version = 11 : i64} {
  func.func @light_dnn_kernel(%arg0: i32, %arg1: memref<8x32xf32, #tpu.memory_space<vmem>>, %arg2: memref<8x32xf32, #tpu.memory_space<vmem>>, %arg3: memref<1x32xf32, #tpu.memory_space<vmem>>, %arg4: memref<1xf32, #tpu.memory_space<smem>>, %arg5: memref<1x1x8xf32, #tpu.memory_space<vmem>>) attributes {dimension_semantics = [#tpu.dimension_semantics<parallel>], iteration_bounds = array<i64: 1>, scalar_prefetch = 0 : i64, scratch_operands = 0 : i64, tpu.core_type = #tpu.core_type<tc>, window_params = [{transform_indices = @transform_0, window_bounds = array<i64: 8, 32>}, {transform_indices = @transform_1, window_bounds = array<i64: 8, 32>}, {pipeline_mode = #tpu.pipeline_mode<synchronous>, transform_indices = @transform_2, window_bounds = array<i64: 1, 32>}, {transform_indices = @transform_3, window_bounds = array<i64: 1>}, {transform_indices = @transform_4, window_bounds = array<i64: 1, 1, 8>}]} {
    %c0 = arith.constant 0 : index
    %c0_0 = arith.constant 0 : index
    %0 = vector.load %arg1[%c0, %c0_0] : memref<8x32xf32, #tpu.memory_space<vmem>>, vector<8x32xf32>
    %c0_1 = arith.constant 0 : index
    %c0_2 = arith.constant 0 : index
    %1 = vector.load %arg2[%c0_1, %c0_2] : memref<8x32xf32, #tpu.memory_space<vmem>>, vector<8x32xf32>
    %2 = arith.mulf %0, %1 : vector<8x32xf32>
    %c0_3 = arith.constant 0 : index
    %c0_4 = arith.constant 0 : index
    %3 = vector.load %arg3[%c0_3, %c0_4] : memref<1x32xf32, #tpu.memory_space<vmem>>, vector<1x32xf32>
    %4 = vector.broadcast %3 : vector<1x32xf32> to vector<8x32xf32>
    %5 = arith.mulf %2, %4 : vector<8x32xf32>
    %cst = arith.constant dense<0.000000e+00> : vector<8xf32>
    %6 = vector.multi_reduction <add>, %5, %cst [1] : vector<8x32xf32> to vector<8xf32>
    %c0_5 = arith.constant 0 : index
    %7 = memref.load %arg4[%c0_5] : memref<1xf32, #tpu.memory_space<smem>>
    %8 = vector.broadcast %7 : f32 to vector<8xf32>
    %9 = arith.addf %6, %8 : vector<8xf32>
    %10 = arith.negf %9 : vector<8xf32>
    %11 = math.exp %10 : vector<8xf32>
    %cst_6 = arith.constant 1.000000e+00 : f32
    %12 = vector.broadcast %cst_6 : f32 to vector<8xf32>
    %13 = arith.addf %12, %11 : vector<8xf32>
    %14 = arith.divf %12, %13 : vector<8xf32>
    %15 = vector.shape_cast %14 : vector<8xf32> to vector<1x1x8xf32>
    %c0_7 = arith.constant 0 : index
    %c0_8 = arith.constant 0 : index
    %c0_9 = arith.constant 0 : index
    %16 = vector.load %arg5[%c0_7, %c0_8, %c0_9] : memref<1x1x8xf32, #tpu.memory_space<vmem>>, vector<1x1x8xf32>
    tpu.vector_store %arg5[%c0_7, %c0_8, %c0_9], %15 {strides = array<i32>} : memref<1x1x8xf32, #tpu.memory_space<vmem>>, vector<1x1x8xf32>,
    return
  }
  func.func @transform_0(%arg0: i32) -> (i32, i32) {
    %c0_i32 = arith.constant 0 : i32
    %c0_i32_0 = arith.constant 0 : i32
    return %arg0, %c0_i32 : i32, i32
  }
  func.func @transform_1(%arg0: i32) -> (i32, i32) {
    %c0_i32 = arith.constant 0 : i32
    %c0_i32_0 = arith.constant 0 : i32
    return %arg0, %c0_i32 : i32, i32
  }
  func.func @transform_2(%arg0: i32) -> (i32, i32) {
    %c0_i32 = arith.constant 0 : i32
    %c0_i32_0 = arith.constant 0 : i32
    %c0_i32_1 = arith.constant 0 : i32
    return %c0_i32, %c0_i32_0 : i32, i32
  }
  func.func @transform_3(%arg0: i32) -> i32 {
    %c0_i32 = arith.constant 0 : i32
    %c0_i32_0 = arith.constant 0 : i32
    return %c0_i32 : i32
  }
  func.func @transform_4(%arg0: i32) -> (i32, i32, i32) {
    %c0_i32 = arith.constant 0 : i32
    %c0_i32_0 = arith.constant 0 : i32
    %c0_i32_1 = arith.constant 0 : i32
    return %arg0, %c0_i32, %c0_i32_0 : i32, i32, i32
  }
}

</mosaic_0001>

<llo_original>
// kernel: tpu_custom_call.1
$region0: #{tpu_custom_call.1}
  #allocation0 [shape = 'u32[]', space=smem, size = 0x4, offset = 0x4, fixed_abs, tag = 'smem constant byte address 0x4 - core index']
  #allocation1 [shape = 'u32[144,128]{1,0:T(1,128)}', space=vmem, size = 0x12000, scoped, tag = 'internal scratch']
  #allocation2 [shape = 'f32[1]{0:T(128)S(6)}', space=smem, size = 0x200, scoped, tag = 'scoped memory for tpu_custom_call.1']
  %s0 = inlined_call_operand.hbm [shape: f32[8,32], index: 0, kind: input, shape index: {}]
  %s1 = inlined_call_operand.hbm [shape: f32[8,32], index: 1, kind: input, shape index: {}]
  %s2 = inlined_call_operand.vmem [shape: f32[1,32], index: 2, kind: input, shape index: {}]
  %s3 = inlined_call_operand.<no memory space> [shape: f32[1], index: 3, kind: input, shape index: {}]
  %s4 = inlined_call_operand.hbm [shape: f32[1,1,8], index: 4, kind: output, shape index: {}]
  %s5 = sld [smem:[#allocation0]]
  $region34: #{tpu_custom_call.1} parent=0
    _
  %s7 = ssub.s32 1, %s5
  %s8 = scalar_select 0, %s7, %s5
  %9 = sst [smem:[#allocation2]] %s3
  $region1: #{tpu_custom_call.1} parent=0
    #allocation3 [shape = 'u8[4096]{0}', space=vmem, size = 0x1000, scoped, tag = 'input window, operand 0, single buffered']
    #allocation4 [shape = 's32[1]{0}', space=sflag, size = 0x4, scoped, tag = 'scoped memory for tpu_custom_call.1']
    #allocation5 [shape = 's32[1]{0}', space=sflag, size = 0x4, scoped, tag = 'scoped memory for tpu_custom_call.1']
    #allocation6 [shape = 'u8[4096]{0}', space=vmem, size = 0x1000, scoped, tag = 'input window, operand 1, single buffered']
    #allocation7 [shape = 's32[1]{0}', space=sflag, size = 0x4, scoped, tag = 'scoped memory for tpu_custom_call.1']
    #allocation8 [shape = 'u8[512]{0}', space=vmem, size = 0x400, scoped, tag = 'output window, operand 0, single buffered']
    %10 = vsyncpa [#allocation4], 0
    %11 = vsyncpa [#allocation7], 0
    %12 = vsyncpa [#allocation5], 0
    // Predicated region
    $region2: #{tpu_custom_call.1} parent=1 // pred_check
      _
    $region3: #{tpu_custom_call.1} parent=1 // pred_check_branch
      %14 = sbr.rel (0) target = $region5
    $region4: #{tpu_custom_call.1} parent=1 // pred_region
      %s16 = ssub.s32 128, 128
      %17 = vsyncadd [#allocation4], %s16
      %s19 = sshll.u32 [#allocation3], 4
      %s20 = int_to_ptr.vmem [resolvable:$true] %s19
      %22 = dma.hbm_to_vmem [thread:$0]  %s0, 128, %s20, [#allocation4]
    $region5: #{tpu_custom_call.1} parent=1 // pred_fallthru
      _
    // Predicated region
    $region6: #{tpu_custom_call.1} parent=1 // pred_check
      _
    $region7: #{tpu_custom_call.1} parent=1 // pred_check_branch
      %24 = sbr.rel (0) target = $region9
    $region8: #{tpu_custom_call.1} parent=1 // pred_region
      %s26 = ssub.s32 128, 128
      %27 = vsyncadd [#allocation7], %s26
      %s29 = sshll.u32 [#allocation6], 4
      %s30 = int_to_ptr.vmem [resolvable:$true] %s29
      %32 = dma.hbm_to_vmem [thread:$0]  %s1, 128, %s30, [#allocation7]
    $region9: #{tpu_custom_call.1} parent=1 // pred_fallthru
      _
    // Predicated region
    $region10: #{tpu_custom_call.1} parent=1 // pred_check
      _
    $region11: #{tpu_custom_call.1} parent=1 // pred_check_branch
      %34 = sbr.rel (0) target = $region13
    $region12: #{tpu_custom_call.1} parent=1 // pred_region
      _
    $region13: #{tpu_custom_call.1} parent=1 // pred_fallthru
      _
    // Predicated region
    $region14: #{tpu_custom_call.1} parent=1 // pred_check
      _
    $region15: #{tpu_custom_call.1} parent=1 // pred_check_branch
      %36 = sbr.rel (0) target = $region17
    $region16: #{tpu_custom_call.1} parent=1 // pred_region
      _
    $region17: #{tpu_custom_call.1} parent=1 // pred_fallthru
      _
    // Predicated region
    $region18: #{tpu_custom_call.1} parent=1 // pred_check
      _
    $region19: #{tpu_custom_call.1} parent=1 // pred_check_branch
      %38 = sbr.rel (0) target = $region21
    $region20: #{tpu_custom_call.1} parent=1 // pred_region
      %39 = dma.done [#allocation4], 128
    $region21: #{tpu_custom_call.1} parent=1 // pred_fallthru
      _
    // Predicated region
    $region22: #{tpu_custom_call.1} parent=1 // pred_check
      _
    $region23: #{tpu_custom_call.1} parent=1 // pred_check_branch
      %41 = sbr.rel (0) target = $region25
    $region24: #{tpu_custom_call.1} parent=1 // pred_region
      %42 = dma.done [#allocation7], 128
    $region25: #{tpu_custom_call.1} parent=1 // pred_fallthru
      _
    %v43 = vld [vmem:[#allocation3] sm:$0xff]
    %v44 = vld [vmem:[#allocation6] sm:$0xff]
    %v45 = vmul.f32 %v43, %v44
    %v46 = vld [vmem:[%s2] sm:$0x1]
    %v48 = vlaneseq
    %v49 = vshrl.u32 %v48, 7
    %v50 = vsub.s32 0, %v49
    %v51 = vrot.slane %v46, %v50
    %v53 = vmul.f32 %v45, %v51
    %vm54 = vcmask 261120
    %v55 = vsel %vm54, %v53, 0.0
    %56 = vadd.xlane.f32.xlu0 %v55
    %v57 = vpop.xlane.xlu0 %56
    %s58 = sld [smem:[#allocation2]]
    %v59 = vstv %s58
    %v60 = vadd.f32 %v57, %v59
    %v61 = vxor.u32 %v60, 2147483648
    %v62 = vmul.f32 %v61, 1.442695
    %v63 = vpow.pop %v62
    %v64 = vadd.f32 %v63, 1.0
    %v65 = vrcp.pop %v64
    %v66 = vmul.f32 1.0, %v65
    %v68 = vlaneseq
    %v69 = vand.u32 %v68, 127
    %v70 = vlaneseq
    %v71 = vshrl.u32 %v70, 7
    %v72 = vsub.s32 %v69, %v71
    %v73 = vrot.slane %v66, %v72
    %vm75 = vcmask 57344
    %76 = vst.msk [vmem:[#allocation8] sm:$0x1] %vm75, %v73
    // Predicated region
    $region26: #{tpu_custom_call.1} parent=1 // pred_check
      _
    $region27: #{tpu_custom_call.1} parent=1 // pred_check_branch
      %78 = sbr.rel (0) target = $region29
    $region28: #{tpu_custom_call.1} parent=1 // pred_region
      %s80 = ssub.s32 16, 16
      %81 = vsyncadd [#allocation5], %s80
      %s83 = sshll.u32 [#allocation8], 4
      %s84 = int_to_ptr.vmem [resolvable:$true] %s83
      %86 = dma.vmem_to_hbm [thread:$0]  %s84, 16, %s4, [#allocation5]
    $region29: #{tpu_custom_call.1} parent=1 // pred_fallthru
      _
    // Predicated region
    $region30: #{tpu_custom_call.1} parent=1 // pred_check
      _
    $region31: #{tpu_custom_call.1} parent=1 // pred_check_branch
      %88 = sbr.rel (0) target = $region33
    $region32: #{tpu_custom_call.1} parent=1 // pred_region
      %89 = dma.done [#allocation5], 16
    $region33: #{tpu_custom_call.1} parent=1 // pred_fallthru
      _
    %90 = vsyncpa [#allocation4], 1
    %91 = vsyncpa [#allocation7], 1
    %92 = vsyncpa [#allocation5], 1

</llo_original>
